<compile_context>
chip_gen: v7x
topology: tpu7x:2x2x1
jax: 0.10.0
libtpu: 0.0.40
codegen_flags: <defaults>
</compile_context>

<pallas_src>
import functools

import jax
import jax.numpy as jnp
from jax.experimental import pallas as pl
from jax.experimental.pallas import tpu as pltpu

_HIDDEN = 64
_MAX_TILE = 2048  # rows per grid step on the large-batch path


def _mlp_kernel(x_ref, w1_ref, b1_ref, w2_ref, b2_ref, w3_ref, b3_ref, o_ref):
    # MXU compute dtype follows the weight dtype (bf16 default / f32 opt-in);
    # bias adds, ReLU and the accumulation stay in f32.
    cd = w1_ref.dtype

    h1 = jnp.dot(x_ref[...].astype(cd), w1_ref[...],
                 preferred_element_type=jnp.float32) + b1_ref[...]
    h1 = jnp.maximum(h1, 0.0)

    h2 = jnp.dot(h1.astype(cd), w2_ref[...],
                 preferred_element_type=jnp.float32) + b2_ref[...]
    h2 = jnp.maximum(h2, 0.0)

    out = jnp.dot(h2.astype(cd), w3_ref[...],
                  preferred_element_type=jnp.float32) + b3_ref[...]
    o_ref[...] = out.astype(o_ref.dtype)


def _round_up(x, m):
    return ((x + m - 1) // m) * m


@functools.lru_cache(maxsize=None)
def _num_tensorcores():
    """Best-effort TensorCores-per-device query (for megacore-style splits)."""
    try:
        info = pltpu.get_tpu_info()
        for name in ("num_cores", "core_count", "num_tensorcores",
                     "tensorcores_per_chip"):
            n = getattr(info, name, None)
            if isinstance(n, int) and n > 0:
                return n
    except Exception:
        pass
    try:
        kind = jax.devices()[0].device_kind.lower()
    except Exception:
        kind = ""
    # v4 / v5p megacore and v7x expose 2 TensorCores behind one device.
    if ("v4" in kind) or ("v5p" in kind) or ("7" in kind):
        return 2
    return 1


def _batch_tile(batch, n_cores):
    """Rows per grid step: few large tiles; split only when it buys parallelism."""
    if batch <= 256 or (batch <= _MAX_TILE and n_cores <= 1):
        return batch  # single full block; splitting only adds per-step overhead
    # Enough steps to keep tiles <= _MAX_TILE, rounded up to a multiple of the
    # TensorCore count so every core gets balanced work under "parallel".
    steps = pl.cdiv(batch, _MAX_TILE)
    steps = _round_up(steps, max(n_cores, 1))
    return _round_up(pl.cdiv(batch, steps), 8)


@jax.jit
def _forward(x, w1, b1, w2, b2, w3, b3):
    B, Din = x.shape
    Dout = w3.shape[1]

    tile_b = _batch_tile(B, _num_tensorcores())
    grid = (pl.cdiv(B, tile_b),)

    return pl.pallas_call(
        _mlp_kernel,
        out_shape=jax.ShapeDtypeStruct((B, Dout), jnp.float32),
        grid_spec=pl.GridSpec(
            grid=grid,
            in_specs=[
                pl.BlockSpec((tile_b, Din), lambda i: (i, 0)),  # x tile
                pl.BlockSpec(w1.shape, lambda i: (0, 0)),       # w1 (Din, 64)
                pl.BlockSpec(b1.shape, lambda i: (0, 0)),       # b1 (1, 64)
                pl.BlockSpec(w2.shape, lambda i: (0, 0)),       # w2 (64, 64)
                pl.BlockSpec(b2.shape, lambda i: (0, 0)),       # b2 (1, 64)
                pl.BlockSpec(w3.shape, lambda i: (0, 0)),       # w3 (64, Dout)
                pl.BlockSpec(b3.shape, lambda i: (0, 0)),       # b3 (1, Dout)
            ],
            out_specs=pl.BlockSpec((tile_b, Dout), lambda i: (i, 0)),
        ),
        compiler_params=pltpu.CompilerParams(
            dimension_semantics=("parallel",),
        ),
    )(x, w1, b1, w2, b2, w3, b3)


def prepare_params(params, dtype=jnp.bfloat16):
    """One-time (outside the hot path) parameter prep.

    Weights are cast to the MXU compute dtype: bf16 by default (f32
    accumulation is kept in-kernel), or pass dtype=jnp.float32 for exact
    parity with the f32 reference. Biases stay f32 and become (1, N) rows.
    No 128-lane padding is required — blocks use the true feature widths.
    """
    out = {}
    for i in (1, 2, 3):
        out[f"w{i}"] = params[f"w{i}"].astype(dtype)
        out[f"b{i}"] = params[f"b{i}"].astype(jnp.float32).reshape(1, -1)
    return out


def network_forward(x, prepared):
    """Forward pass of the SAC Network MLP via a Pallas TPU kernel.

    x:        (batch, input_dimension) float32
    prepared: output of prepare_params()
    returns   (batch, output_dimension) float32
    """
    p = prepared
    return _forward(x, p["w1"], p["b1"], p["w2"], p["b2"], p["w3"], p["b3"])


def init_params(key, input_dimension, output_dimension):
    """Deterministic init matching torch.nn.Linear's U(-1/sqrt(fan_in), ...)."""
    ks = jax.random.split(key, 6)

    def lin(kw, kb, fan_in, fan_out):
        bound = 1.0 / jnp.sqrt(fan_in)
        w = jax.random.uniform(kw, (fan_in, fan_out), jnp.float32, -bound, bound)
        b = jax.random.uniform(kb, (fan_out,), jnp.float32, -bound, bound)
        return w, b

    w1, b1 = lin(ks[0], ks[1], input_dimension, _HIDDEN)
    w2, b2 = lin(ks[2], ks[3], _HIDDEN, _HIDDEN)
    w3, b3 = lin(ks[4], ks[5], _HIDDEN, output_dimension)
    return {"w1": w1, "b1": b1, "w2": w2, "b2": b2, "w3": w3, "b3": b3}


def _reference_forward(x, p):
    h1 = jnp.maximum(x @ p["w1"] + p["b1"], 0.0)
    h2 = jnp.maximum(h1 @ p["w2"] + p["b2"], 0.0)
    return h2 @ p["w3"] + p["b3"]


if __name__ == "__main__":
    key = jax.random.PRNGKey(0)
    k_x, k_x2, k_x3, k_p = jax.random.split(key, 4)

    batch, input_dimension, output_dimension = 2, 4, 2
    params = init_params(k_p, input_dimension, output_dimension)

    prepared_f32 = prepare_params(params, dtype=jnp.float32)   # exact parity
    prepared_bf16 = prepare_params(params)                     # fast default (bf16)

    # --- small batch, single block -------------------------------------
    x = jax.random.normal(k_x, (batch, input_dimension), jnp.float32)
    ref = _reference_forward(x, params)

    out_f32 = jax.block_until_ready(network_forward(x, prepared_f32))
    assert out_f32.shape == (batch, output_dimension)
    assert jnp.allclose(out_f32, ref, atol=1e-5, rtol=1e-5), \
        "mismatch vs reference (f32, small batch)"

    out_bf16 = jax.block_until_ready(network_forward(x, prepared_bf16))
    assert jnp.allclose(out_bf16, ref, atol=5e-2, rtol=5e-2), \
        "mismatch vs reference (bf16, small batch)"

    # --- mid-size batch (splits across cores only on 2-TC chips) --------
    batch2 = 600
    x2 = jax.random.normal(k_x2, (batch2, input_dimension), jnp.float32)
    ref2 = _reference_forward(x2, params)
    out2 = jax.block_until_ready(network_forward(x2, prepared_f32))
    assert out2.shape == (batch2, output_dimension)
    assert jnp.allclose(out2, ref2, atol=1e-5, rtol=1e-5), \
        "mismatch vs reference (f32, mid batch)"

    # --- large batch with a partial last block (grid = cdiv(B, tile)) ---
    batch3 = 2500
    x3 = jax.random.normal(k_x3, (batch3, input_dimension), jnp.float32)
    ref3 = _reference_forward(x3, params)
    out3 = jax.block_until_ready(network_forward(x3, prepared_f32))
    assert out3.shape == (batch3, output_dimension)
    assert jnp.allclose(out3, ref3, atol=1e-5, rtol=1e-5), \
        "mismatch vs reference (f32, large batch / partial block)"

    print("KERNEL_OK")
</pallas_src>

<mosaic_0001>
module attributes {stable_mosaic.version = 11 : i64} {
  func.func @_mlp_kernel(%arg0: i32, %arg1: memref<2x4xf32, #tpu.memory_space<vmem>>, %arg2: memref<4x64xf32, #tpu.memory_space<vmem>>, %arg3: memref<1x64xf32, #tpu.memory_space<vmem>>, %arg4: memref<64x64xf32, #tpu.memory_space<vmem>>, %arg5: memref<1x64xf32, #tpu.memory_space<vmem>>, %arg6: memref<64x2xf32, #tpu.memory_space<vmem>>, %arg7: memref<1x2xf32, #tpu.memory_space<vmem>>, %arg8: memref<2x2xf32, #tpu.memory_space<vmem>>) attributes {dimension_semantics = [#tpu.dimension_semantics<parallel>], iteration_bounds = array<i64: 1>, scalar_prefetch = 0 : i64, scratch_operands = 0 : i64, tpu.core_type = #tpu.core_type<tc>, window_params = [{transform_indices = @transform_0, window_bounds = array<i64: 2, 4>}, {pipeline_mode = #tpu.pipeline_mode<synchronous>, transform_indices = @transform_1, window_bounds = array<i64: 4, 64>}, {pipeline_mode = #tpu.pipeline_mode<synchronous>, transform_indices = @transform_2, window_bounds = array<i64: 1, 64>}, {pipeline_mode = #tpu.pipeline_mode<synchronous>, transform_indices = @transform_3, window_bounds = array<i64: 64, 64>}, {pipeline_mode = #tpu.pipeline_mode<synchronous>, transform_indices = @transform_4, window_bounds = array<i64: 1, 64>}, {pipeline_mode = #tpu.pipeline_mode<synchronous>, transform_indices = @transform_5, window_bounds = array<i64: 64, 2>}, {pipeline_mode = #tpu.pipeline_mode<synchronous>, transform_indices = @transform_6, window_bounds = array<i64: 1, 2>}, {transform_indices = @transform_7, window_bounds = array<i64: 2, 2>}]} {
    %c0 = arith.constant 0 : index
    %c0_0 = arith.constant 0 : index
    %0 = vector.load %arg1[%c0, %c0_0] : memref<2x4xf32, #tpu.memory_space<vmem>>, vector<2x4xf32>
    %c0_1 = arith.constant 0 : index
    %c0_2 = arith.constant 0 : index
    %1 = vector.load %arg2[%c0_1, %c0_2] : memref<4x64xf32, #tpu.memory_space<vmem>>, vector<4x64xf32>
    %cst = arith.constant dense<0.000000e+00> : vector<2x64xf32>
    %2 = tpu.matmul %0, %1, %cst {dimension_numbers = #tpu.dot_dimension_numbers<[1], [0], [0], [1], [0, 0, 1, 1], [], []>} : vector<2x4xf32>, vector<4x64xf32>, vector<2x64xf32> -> vector<2x64xf32>
    %c0_3 = arith.constant 0 : index
    %c0_4 = arith.constant 0 : index
    %3 = vector.load %arg3[%c0_3, %c0_4] : memref<1x64xf32, #tpu.memory_space<vmem>>, vector<1x64xf32>
    %4 = vector.broadcast %3 : vector<1x64xf32> to vector<2x64xf32>
    %5 = arith.addf %2, %4 : vector<2x64xf32>
    %cst_5 = arith.constant 0.000000e+00 : f32
    %6 = vector.broadcast %cst_5 : f32 to vector<2x64xf32>
    %7 = arith.maximumf %5, %6 : vector<2x64xf32>
    %c0_6 = arith.constant 0 : index
    %c0_7 = arith.constant 0 : index
    %8 = vector.load %arg4[%c0_6, %c0_7] : memref<64x64xf32, #tpu.memory_space<vmem>>, vector<64x64xf32>
    %cst_8 = arith.constant dense<0.000000e+00> : vector<2x64xf32>
    %9 = tpu.matmul %7, %8, %cst_8 {dimension_numbers = #tpu.dot_dimension_numbers<[1], [0], [0], [1], [0, 0, 1, 1], [], []>} : vector<2x64xf32>, vector<64x64xf32>, vector<2x64xf32> -> vector<2x64xf32>
    %c0_9 = arith.constant 0 : index
    %c0_10 = arith.constant 0 : index
    %10 = vector.load %arg5[%c0_9, %c0_10] : memref<1x64xf32, #tpu.memory_space<vmem>>, vector<1x64xf32>
    %11 = vector.broadcast %10 : vector<1x64xf32> to vector<2x64xf32>
    %12 = arith.addf %9, %11 : vector<2x64xf32>
    %cst_11 = arith.constant 0.000000e+00 : f32
    %13 = vector.broadcast %cst_11 : f32 to vector<2x64xf32>
    %14 = arith.maximumf %12, %13 : vector<2x64xf32>
    %c0_12 = arith.constant 0 : index
    %c0_13 = arith.constant 0 : index
    %15 = vector.load %arg6[%c0_12, %c0_13] : memref<64x2xf32, #tpu.memory_space<vmem>>, vector<64x2xf32>
    %cst_14 = arith.constant dense<0.000000e+00> : vector<2x2xf32>
    %16 = tpu.matmul %14, %15, %cst_14 {dimension_numbers = #tpu.dot_dimension_numbers<[1], [0], [0], [1], [0, 0, 1, 1], [], []>} : vector<2x64xf32>, vector<64x2xf32>, vector<2x2xf32> -> vector<2x2xf32>
    %c0_15 = arith.constant 0 : index
    %c0_16 = arith.constant 0 : index
    %17 = vector.load %arg7[%c0_15, %c0_16] : memref<1x2xf32, #tpu.memory_space<vmem>>, vector<1x2xf32>
    %18 = vector.broadcast %17 : vector<1x2xf32> to vector<2x2xf32>
    %19 = arith.addf %16, %18 : vector<2x2xf32>
    %c0_17 = arith.constant 0 : index
    %c0_18 = arith.constant 0 : index
    %20 = vector.load %arg8[%c0_17, %c0_18] : memref<2x2xf32, #tpu.memory_space<vmem>>, vector<2x2xf32>
    tpu.vector_store %arg8[%c0_17, %c0_18], %19 {strides = array<i32>} : memref<2x2xf32, #tpu.memory_space<vmem>>, vector<2x2xf32>,
    return
  }
  func.func @transform_0(%arg0: i32) -> (i32, i32) {
    %c0_i32 = arith.constant 0 : i32
    %c0_i32_0 = arith.constant 0 : i32
    return %arg0, %c0_i32 : i32, i32
  }
  func.func @transform_1(%arg0: i32) -> (i32, i32) {
    %c0_i32 = arith.constant 0 : i32
    %c0_i32_0 = arith.constant 0 : i32
    %c0_i32_1 = arith.constant 0 : i32
    return %c0_i32, %c0_i32_0 : i32, i32
  }
  func.func @transform_2(%arg0: i32) -> (i32, i32) {
    %c0_i32 = arith.constant 0 : i32
    %c0_i32_0 = arith.constant 0 : i32
    %c0_i32_1 = arith.constant 0 : i32
    return %c0_i32, %c0_i32_0 : i32, i32
  }
  func.func @transform_3(%arg0: i32) -> (i32, i32) {
    %c0_i32 = arith.constant 0 : i32
    %c0_i32_0 = arith.constant 0 : i32
    %c0_i32_1 = arith.constant 0 : i32
    return %c0_i32, %c0_i32_0 : i32, i32
  }
  func.func @transform_4(%arg0: i32) -> (i32, i32) {
    %c0_i32 = arith.constant 0 : i32
    %c0_i32_0 = arith.constant 0 : i32
    %c0_i32_1 = arith.constant 0 : i32
    return %c0_i32, %c0_i32_0 : i32, i32
  }
  func.func @transform_5(%arg0: i32) -> (i32, i32) {
    %c0_i32 = arith.constant 0 : i32
    %c0_i32_0 = arith.constant 0 : i32
    %c0_i32_1 = arith.constant 0 : i32
    return %c0_i32, %c0_i32_0 : i32, i32
  }
  func.func @transform_6(%arg0: i32) -> (i32, i32) {
    %c0_i32 = arith.constant 0 : i32
    %c0_i32_0 = arith.constant 0 : i32
    %c0_i32_1 = arith.constant 0 : i32
    return %c0_i32, %c0_i32_0 : i32, i32
  }
  func.func @transform_7(%arg0: i32) -> (i32, i32) {
    %c0_i32 = arith.constant 0 : i32
    %c0_i32_0 = arith.constant 0 : i32
    return %arg0, %c0_i32 : i32, i32
  }
}

</mosaic_0001>

<llo_original>
// kernel: _forward.1
$region0: #{_forward.1}
  #allocation0 [shape = 'u32[]', space=smem, size = 0x4, offset = 0x4, fixed_abs, tag = 'smem constant byte address 0x4 - core index']
  #allocation1 [shape = 'u32[144,128]{1,0:T(1,128)}', space=vmem, size = 0x12000, scoped, tag = 'internal scratch']
  %s0 = inlined_call_operand.vmem [shape: f32[2,4], index: 0, kind: input, shape index: {}]
  %s1 = inlined_call_operand.vmem [shape: f32[4,64], index: 1, kind: input, shape index: {}]
  %s2 = inlined_call_operand.vmem [shape: f32[1,64], index: 2, kind: input, shape index: {}]
  %s3 = inlined_call_operand.vmem [shape: f32[64,64], index: 3, kind: input, shape index: {}]
  %s4 = inlined_call_operand.vmem [shape: f32[1,64], index: 4, kind: input, shape index: {}]
  %s5 = inlined_call_operand.vmem [shape: f32[64,2], index: 5, kind: input, shape index: {}]
  %s6 = inlined_call_operand.vmem [shape: f32[1,2], index: 6, kind: input, shape index: {}]
  %s7 = inlined_call_operand.hbm [shape: f32[2,2], index: 7, kind: output, shape index: {}]
  %s8 = sld [smem:[#allocation0]]
  $region38: #{_forward.1} parent=0
    _
  %s10 = ssub.s32 1, %s8
  %s11 = scalar_select 0, %s10, %s8
  $region1: #{_forward.1} parent=0
    #allocation2 [shape = 'u8[1024]{0}', space=vmem, size = 0x400, scoped, tag = 'output window, operand 0, single buffered']
    #allocation3 [shape = 's32[1]{0}', space=sflag, size = 0x4, scoped, tag = 'scoped memory for _forward.1']
    %12 = vsyncpa [#allocation3], 0
    // Predicated region
    $region2: #{_forward.1} parent=1 // pred_check
      _
    $region3: #{_forward.1} parent=1 // pred_check_branch
      %14 = sbr.rel (0) target = $region5
    $region4: #{_forward.1} parent=1 // pred_region
      _
    $region5: #{_forward.1} parent=1 // pred_fallthru
      _
    // Predicated region
    $region6: #{_forward.1} parent=1 // pred_check
      _
    $region7: #{_forward.1} parent=1 // pred_check_branch
      %16 = sbr.rel (0) target = $region9
    $region8: #{_forward.1} parent=1 // pred_region
      _
    $region9: #{_forward.1} parent=1 // pred_fallthru
      _
    // Predicated region
    $region10: #{_forward.1} parent=1 // pred_check
      _
    $region11: #{_forward.1} parent=1 // pred_check_branch
      %18 = sbr.rel (0) target = $region13
    $region12: #{_forward.1} parent=1 // pred_region
      _
    $region13: #{_forward.1} parent=1 // pred_fallthru
      _
    // Predicated region
    $region14: #{_forward.1} parent=1 // pred_check
      _
    $region15: #{_forward.1} parent=1 // pred_check_branch
      %20 = sbr.rel (0) target = $region17
    $region16: #{_forward.1} parent=1 // pred_region
      _
    $region17: #{_forward.1} parent=1 // pred_fallthru
      _
    // Predicated region
    $region18: #{_forward.1} parent=1 // pred_check
      _
    $region19: #{_forward.1} parent=1 // pred_check_branch
      %22 = sbr.rel (0) target = $region21
    $region20: #{_forward.1} parent=1 // pred_region
      _
    $region21: #{_forward.1} parent=1 // pred_fallthru
      _
    // Predicated region
    $region22: #{_forward.1} parent=1 // pred_check
      _
    $region23: #{_forward.1} parent=1 // pred_check_branch
      %24 = sbr.rel (0) target = $region25
    $region24: #{_forward.1} parent=1 // pred_region
      _
    $region25: #{_forward.1} parent=1 // pred_fallthru
      _
    // Predicated region
    $region26: #{_forward.1} parent=1 // pred_check
      _
    $region27: #{_forward.1} parent=1 // pred_check_branch
      %26 = sbr.rel (0) target = $region29
    $region28: #{_forward.1} parent=1 // pred_region
      _
    $region29: #{_forward.1} parent=1 // pred_fallthru
      _
    %v27 = vld [vmem:[%s0] sm:$0x3]
    %v28 = vld [vmem:[%s1] sm:$0xf]
    %v29 = vld [vmem:[%s2] sm:$0x1]
    %v31 = vlaneseq
    %v32 = vshrl.u32 %v31, 7
    %v33 = vsub.s32 0, %v32
    %v34 = vrot.slane %v29, %v33
    %vm36 = vcmask 31744
    %v38 = vsel %vm36, %v27, 0
    %vm40 = vcmask 1043456
    %v42 = vsel %vm40, %v28, 0
    %44 = vmatprep.subr.mxu0 0.0
    %45 = vmatpush1.msra.mxu0 %v42
    %46 = vmatprep.subr.mxu0 0.0
    %47 = vmatpush1.msra.mxu0 0.0
    %48 = vmatprep.subr.mxu0 0.0
    %49 = vmatpush1.msra.mxu0 0.0
    %50 = vmatprep.subr.mxu0 0.0
    %51 = vmatpush1.msra.mxu0 0.0
    %52 = vmatprep.subr.mxu0 0.0
    %53 = vmatpush1.msra.mxu0 0.0
    %54 = vmatprep.subr.mxu0 0.0
    %55 = vmatpush1.msra.mxu0 0.0
    %56 = vmatprep.subr.mxu0 0.0
    %57 = vmatpush1.msra.mxu0 0.0
    %58 = vmatprep.subr.mxu0 0.0
    %59 = vmatpush1.msra.mxu0 0.0
    %60 = vmatprep.subr.mxu0 0.0
    %61 = vmatpush1.msra.mxu0 0.0
    %62 = vmatprep.subr.mxu0 0.0
    %63 = vmatpush1.msra.mxu0 0.0
    %64 = vmatprep.subr.mxu0 0.0
    %65 = vmatpush1.msra.mxu0 0.0
    %66 = vmatprep.subr.mxu0 0.0
    %67 = vmatpush1.msra.mxu0 0.0
    %68 = vmatprep.subr.mxu0 0.0
    %69 = vmatpush1.msra.mxu0 0.0
    %70 = vmatprep.subr.mxu0 0.0
    %71 = vmatpush1.msra.mxu0 0.0
    %72 = vmatprep.subr.mxu0 0.0
    %73 = vmatpush1.msra.mxu0 0.0
    %74 = vmatprep.subr.mxu0 0.0
    %75 = vmatpush1.msra.mxu0 0.0
    %76 = vmatprep.subr.mxu0 0.0
    %77 = vmatpush1.msra.mxu0 0.0
    %78 = vmatprep.subr.mxu0 0.0
    %79 = vmatpush1.msra.mxu0 0.0
    %80 = vmatprep.subr.mxu0 0.0
    %81 = vmatpush1.msra.mxu0 0.0
    %82 = vmatprep.subr.mxu0 0.0
    %83 = vmatpush1.msra.mxu0 0.0
    %84 = vmatprep.subr.mxu0 0.0
    %85 = vmatpush1.msra.mxu0 0.0
    %86 = vmatprep.subr.mxu0 0.0
    %87 = vmatpush1.msra.mxu0 0.0
    %88 = vmatprep.subr.mxu0 0.0
    %89 = vmatpush1.msra.mxu0 0.0
    %90 = vmatprep.subr.mxu0 0.0
    %91 = vmatpush1.msra.mxu0 0.0
    %92 = vmatprep.subr.mxu0 0.0
    %93 = vmatpush1.msra.mxu0 0.0
    %94 = vmatprep.subr.mxu0 0.0
    %95 = vmatpush1.msra.mxu0 0.0
    %96 = vmatprep.subr.mxu0 0.0
    %97 = vmatpush1.msra.mxu0 0.0
    %98 = vmatprep.subr.mxu0 0.0
    %99 = vmatpush1.msra.mxu0 0.0
    %100 = vmatprep.subr.mxu0 0.0
    %101 = vmatpush1.msra.mxu0 0.0
    %102 = vmatprep.subr.mxu0 0.0
    %103 = vmatpush1.msra.mxu0 0.0
    %104 = vmatprep.subr.mxu0 0.0
    %105 = vmatpush1.msra.mxu0 0.0
    %106 = vmatprep.subr.mxu0 0.0
    %107 = vmatpush1.msra.mxu0 0.0
    %108 = vmatprep.mubr.f32.mxu0 0.0
    %109 = vmatmul.mubr.f32.gmra.mrb[0].mxu0 %v38
    %v110 = vpop.f32.mrb[0].mxu0
    %v111 = vadd.f32 %v34, %v110
    %v112 = vpop.f32.mrb[0].mxu0
    %113 = vdwg.mxu0
    %v114 = vmax.f32 %v111, 0.0
    %v115 = vld [vmem:[%s3] sm:$0xff]
    %v116 = vld [vmem:[%s3 + $0x8] sm:$0xff]
    %v117 = vld [vmem:[%s3 + $0x10] sm:$0xff]
    %v118 = vld [vmem:[%s3 + $0x18] sm:$0xff]
    %v119 = vld [vmem:[%s3 + $0x20] sm:$0xff]
    %v120 = vld [vmem:[%s3 + $0x28] sm:$0xff]
    %v121 = vld [vmem:[%s3 + $0x30] sm:$0xff]
    %v122 = vld [vmem:[%s3 + $0x38] sm:$0xff]
    %v123 = vld [vmem:[%s4] sm:$0x1]
    %v125 = vlaneseq
    %v126 = vshrl.u32 %v125, 7
    %v127 = vsub.s32 0, %v126
    %v128 = vrot.slane %v123, %v127
    %vm130 = vcmask 523264
    %v132 = vsel %vm130, %v114, 0
    %134 = vmatprep.subr.mxu0 0.0
    %135 = vmatpush1.msra.mxu0 %v115
    %136 = vmatprep.subr.mxu0 0.0
    %137 = vmatpush1.msra.mxu0 %v116
    %138 = vmatprep.subr.mxu0 0.0
    %139 = vmatpush1.msra.mxu0 %v117
    %140 = vmatprep.subr.mxu0 0.0
    %141 = vmatpush1.msra.mxu0 %v118
    %142 = vmatprep.subr.mxu0 0.0
    %143 = vmatpush1.msra.mxu0 %v119
    %144 = vmatprep.subr.mxu0 0.0
    %145 = vmatpush1.msra.mxu0 %v120
    %146 = vmatprep.subr.mxu0 0.0
    %147 = vmatpush1.msra.mxu0 %v121
    %148 = vmatprep.subr.mxu0 0.0
    %149 = vmatpush1.msra.mxu0 %v122
    %150 = vmatprep.subr.mxu0 0.0
    %151 = vmatpush1.msra.mxu0 0.0
    %152 = vmatprep.subr.mxu0 0.0
    %153 = vmatpush1.msra.mxu0 0.0
    %154 = vmatprep.subr.mxu0 0.0
    %155 = vmatpush1.msra.mxu0 0.0
    %156 = vmatprep.subr.mxu0 0.0
    %157 = vmatpush1.msra.mxu0 0.0
    %158 = vmatprep.subr.mxu0 0.0
    %159 = vmatpush1.msra.mxu0 0.0
    %160 = vmatprep.subr.mxu0 0.0
    %161 = vmatpush1.msra.mxu0 0.0
    %162 = vmatprep.subr.mxu0 0.0
    %163 = vmatpush1.msra.mxu0 0.0
    %164 = vmatprep.subr.mxu0 0.0
    %165 = vmatpush1.msra.mxu0 0.0
    %166 = vmatprep.subr.mxu0 0.0
    %167 = vmatpush1.msra.mxu0 0.0
    %168 = vmatprep.subr.mxu0 0.0
    %169 = vmatpush1.msra.mxu0 0.0
    %170 = vmatprep.subr.mxu0 0.0
    %171 = vmatpush1.msra.mxu0 0.0
    %172 = vmatprep.subr.mxu0 0.0
    %173 = vmatpush1.msra.mxu0 0.0
    %174 = vmatprep.subr.mxu0 0.0
    %175 = vmatpush1.msra.mxu0 0.0
    %176 = vmatprep.subr.mxu0 0.0
    %177 = vmatpush1.msra.mxu0 0.0
    %178 = vmatprep.subr.mxu0 0.0
    %179 = vmatpush1.msra.mxu0 0.0
    %180 = vmatprep.subr.mxu0 0.0
    %181 = vmatpush1.msra.mxu0 0.0
    %182 = vmatprep.subr.mxu0 0.0
    %183 = vmatpush1.msra.mxu0 0.0
    %184 = vmatprep.subr.mxu0 0.0
    %185 = vmatpush1.msra.mxu0 0.0
    %186 = vmatprep.subr.mxu0 0.0
    %187 = vmatpush1.msra.mxu0 0.0
    %188 = vmatprep.subr.mxu0 0.0
    %189 = vmatpush1.msra.mxu0 0.0
    %190 = vmatprep.subr.mxu0 0.0
    %191 = vmatpush1.msra.mxu0 0.0
    %192 = vmatprep.subr.mxu0 0.0
    %193 = vmatpush1.msra.mxu0 0.0
    %194 = vmatprep.subr.mxu0 0.0
    %195 = vmatpush1.msra.mxu0 0.0
    %196 = vmatprep.subr.mxu0 0.0
    %197 = vmatpush1.msra.mxu0 0.0
    %198 = vmatprep.mubr.f32.mxu0 0.0
    %199 = vmatmul.mubr.f32.gmra.mrb[0].mxu0 %v132
    %v200 = vpop.f32.mrb[0].mxu0
    %v201 = vadd.f32 %v128, %v200
    %v202 = vpop.f32.mrb[0].mxu0
    %203 = vdwg.mxu0
    %v204 = vmax.f32 %v201, 0.0
    %v205 = vld [vmem:[%s5] sm:$0xff]
    %v206 = vld [vmem:[%s5 + $0x8] sm:$0xff]
    %v207 = vld [vmem:[%s5 + $0x10] sm:$0xff]
    %v208 = vld [vmem:[%s5 + $0x18] sm:$0xff]
    %v209 = vld [vmem:[%s5 + $0x20] sm:$0xff]
    %v210 = vld [vmem:[%s5 + $0x28] sm:$0xff]
    %v211 = vld [vmem:[%s5 + $0x30] sm:$0xff]
    %v212 = vld [vmem:[%s5 + $0x38] sm:$0xff]
    %v213 = vld [vmem:[%s6] sm:$0x1]
    %v215 = vlaneseq
    %v216 = vshrl.u32 %v215, 7
    %v217 = vsub.s32 0, %v216
    %v218 = vrot.slane %v213, %v217
    %v221 = vsel %vm130, %v204, 0
    %223 = vmatprep.subr.mxu0 0.0
    %224 = vmatpush1.msra.mxu0 %v205
    %225 = vmatprep.subr.mxu0 0.0
    %226 = vmatpush1.msra.mxu0 %v206
    %227 = vmatprep.subr.mxu0 0.0
    %228 = vmatpush1.msra.mxu0 %v207
    %229 = vmatprep.subr.mxu0 0.0
    %230 = vmatpush1.msra.mxu0 %v208
    %231 = vmatprep.subr.mxu0 0.0
    %232 = vmatpush1.msra.mxu0 %v209
    %233 = vmatprep.subr.mxu0 0.0
    %234 = vmatpush1.msra.mxu0 %v210
    %235 = vmatprep.subr.mxu0 0.0
    %236 = vmatpush1.msra.mxu0 %v211
    %237 = vmatprep.subr.mxu0 0.0
    %238 = vmatpush1.msra.mxu0 %v212
    %239 = vmatprep.subr.mxu0 0.0
    %240 = vmatpush1.msra.mxu0 0.0
    %241 = vmatprep.subr.mxu0 0.0
    %242 = vmatpush1.msra.mxu0 0.0
    %243 = vmatprep.subr.mxu0 0.0
    %244 = vmatpush1.msra.mxu0 0.0
    %245 = vmatprep.subr.mxu0 0.0
    %246 = vmatpush1.msra.mxu0 0.0
    %247 = vmatprep.subr.mxu0 0.0
    %248 = vmatpush1.msra.mxu0 0.0
    %249 = vmatprep.subr.mxu0 0.0
    %250 = vmatpush1.msra.mxu0 0.0
    %251 = vmatprep.subr.mxu0 0.0
    %252 = vmatpush1.msra.mxu0 0.0
    %253 = vmatprep.subr.mxu0 0.0
    %254 = vmatpush1.msra.mxu0 0.0
    %255 = vmatprep.subr.mxu0 0.0
    %256 = vmatpush1.msra.mxu0 0.0
    %257 = vmatprep.subr.mxu0 0.0
    %258 = vmatpush1.msra.mxu0 0.0
    %259 = vmatprep.subr.mxu0 0.0
    %260 = vmatpush1.msra.mxu0 0.0
    %261 = vmatprep.subr.mxu0 0.0
    %262 = vmatpush1.msra.mxu0 0.0
    %263 = vmatprep.subr.mxu0 0.0
    %264 = vmatpush1.msra.mxu0 0.0
    %265 = vmatprep.subr.mxu0 0.0
    %266 = vmatpush1.msra.mxu0 0.0
    %267 = vmatprep.subr.mxu0 0.0
    %268 = vmatpush1.msra.mxu0 0.0
    %269 = vmatprep.subr.mxu0 0.0
    %270 = vmatpush1.msra.mxu0 0.0
    %271 = vmatprep.subr.mxu0 0.0
    %272 = vmatpush1.msra.mxu0 0.0
    %273 = vmatprep.subr.mxu0 0.0
    %274 = vmatpush1.msra.mxu0 0.0
    %275 = vmatprep.subr.mxu0 0.0
    %276 = vmatpush1.msra.mxu0 0.0
    %277 = vmatprep.subr.mxu0 0.0
    %278 = vmatpush1.msra.mxu0 0.0
    %279 = vmatprep.subr.mxu0 0.0
    %280 = vmatpush1.msra.mxu0 0.0
    %281 = vmatprep.subr.mxu0 0.0
    %282 = vmatpush1.msra.mxu0 0.0
    %283 = vmatprep.subr.mxu0 0.0
    %284 = vmatpush1.msra.mxu0 0.0
    %285 = vmatprep.subr.mxu0 0.0
    %286 = vmatpush1.msra.mxu0 0.0
    %287 = vmatprep.mubr.f32.mxu0 0.0
    %288 = vmatmul.mubr.f32.gmra.mrb[0].mxu0 %v221
    %v289 = vpop.f32.mrb[0].mxu0
    %v290 = vadd.f32 %v218, %v289
    %v291 = vpop.f32.mrb[0].mxu0
    %292 = vdwg.mxu0
    %vm293 = vcmask 9216
    %294 = vst.msk [vmem:[#allocation2] sm:$0x3] %vm293, %v290
    // Predicated region
    $region30: #{_forward.1} parent=1 // pred_check
      _
    $region31: #{_forward.1} parent=1 // pred_check_branch
      %296 = sbr.rel (0) target = $region33
    $region32: #{_forward.1} parent=1 // pred_region
      %s298 = ssub.s32 32, 32
      %299 = vsyncadd [#allocation3], %s298
      %s301 = sshll.u32 [#allocation2], 4
      %s302 = int_to_ptr.vmem [resolvable:$true] %s301
      %304 = dma.vmem_to_hbm [thread:$0]  %s302, 32, %s7, [#allocation3]
    $region33: #{_forward.1} parent=1 // pred_fallthru
      _
    // Predicated region
    $region34: #{_forward.1} parent=1 // pred_check
      _
    $region35: #{_forward.1} parent=1 // pred_check_branch
      %306 = sbr.rel (0) target = $region37
    $region36: #{_forward.1} parent=1 // pred_region
      %307 = dma.done [#allocation3], 32
    $region37: #{_forward.1} parent=1 // pred_fallthru
      _
    %308 = vsyncpa [#allocation3], 1

</llo_original>
